<compile_context>
chip_gen: v7x
topology: tpu7x:2x2x1
jax: 0.10.0
libtpu: 0.0.40
codegen_flags: <defaults>
</compile_context>

<pallas_src>
import jax
import jax.numpy as jnp
import numpy as np
from jax.experimental import pallas as pl
from jax.experimental.pallas import tpu as pltpu

_LANES = 128
_MAX_BLOCK_ROWS = 1024  # (1024,128) f32 = 0.5 MiB/stream; safe on v5e/v6e/v7x


def _add_noise_kernel(x_ref, noise_ref, o_ref):
    # noise carries -1.0 sentinel where no noise was injected; uniform noise
    # is in [0, 1), so `noise >= 0` selects the injected positions.
    n = noise_ref[...]
    o_ref[...] = jnp.where(n >= 0.0, n.astype(o_ref.dtype), x_ref[...])


def add_noise(x, key, noise_rate=0.1):
    """Pallas equivalent of AddNoise.forward.

    Replaces int(length * noise_rate) distinct elements of x (chosen at
    random) with uniform [0, 1) noise, preserving shape and dtype.
    """
    shape = x.shape
    dtype = x.dtype
    length = int(np.prod(shape))
    k = int(length * noise_rate)

    kidx, kval = jax.random.split(key)
    # random.sample -> k distinct flat indices; uniform [0,1) float32 noise.
    # TODO(synk): a full-length permutation is the simplest distinct-index draw;
    # a k-sized Gumbel-top-k draw would shave one full-array wrapper pass.
    idx = jax.random.permutation(kidx, length)[:k]
    noise_vals = jax.random.uniform(kval, (k,), dtype=jnp.float32)

    # Sublane multiple depends on dtype packing (f32 -> 8, bf16/f16 -> 16, i8 -> 32).
    itemsize = jnp.dtype(dtype).itemsize
    sub = 8 * max(1, 4 // itemsize)

    # Pick the block row count: up to _MAX_BLOCK_ROWS, rounded to the sublane
    # multiple, and pad total rows to a whole number of blocks.
    rows_min = -(-length // _LANES)                       # cdiv(length, 128)
    block_rows = min(_MAX_BLOCK_ROWS, ((rows_min + sub - 1) // sub) * sub)
    rows = ((rows_min + block_rows - 1) // block_rows) * block_rows
    padded = rows * _LANES
    pad = padded - length

    # x stream: keep native dtype, single pad pass, lane-dense [rows, 128] view.
    x2d = jnp.pad(x.reshape(length), (0, pad)).reshape(rows, _LANES)

    # noise stream: sentinel-filled at padded size, one scatter, no pad pass.
    noise2d = (
        jnp.full((padded,), -1.0, dtype=jnp.float32)
        .at[idx]
        .set(noise_vals, unique_indices=True)
        .reshape(rows, _LANES)
    )

    grid = (rows // block_rows,)
    block = (block_rows, _LANES)
    spec = pl.BlockSpec(block, lambda i: (i, 0))

    out2d = pl.pallas_call(
        _add_noise_kernel,
        out_shape=jax.ShapeDtypeStruct((rows, _LANES), dtype),
        grid_spec=pltpu.PrefetchScalarGridSpec(
            num_scalar_prefetch=0,
            grid=grid,
            in_specs=[spec, spec],
            out_specs=spec,
        ),
        input_output_aliases={0: 0},  # reuse x2d's HBM buffer for the output
        compiler_params=pltpu.CompilerParams(
            dimension_semantics=("parallel",),
        ),
    )(x2d, noise2d)

    return out2d.reshape(padded)[:length].reshape(shape)


if __name__ == "__main__":
    key = jax.random.PRNGKey(0)
    kx, knoise = jax.random.split(key)

    # small NCHW-like input consistent with an image transform module
    x = jax.random.normal(kx, (2, 4, 16, 16), dtype=jnp.float32)

    out = add_noise(x, knoise, noise_rate=0.1)
    out = jax.block_until_ready(out)

    # sanity checks (not part of the kernel): shape/dtype preserved,
    # at most ~10% of elements replaced, the rest untouched.
    assert out.shape == x.shape
    assert out.dtype == x.dtype
    length = int(np.prod(x.shape))
    k = int(length * 0.1)
    changed = int(jnp.sum(out != x))
    assert changed <= k, (changed, k)
    # replaced elements carry uniform [0,1) noise
    assert bool(jnp.all(jnp.where(out != x, (out >= 0) & (out < 1), True)))

    print("KERNEL_OK")
</pallas_src>

<mosaic_0001>
module attributes {stable_mosaic.version = 11 : i64} {
  func.func @_add_noise_kernel(%arg0: i32, %arg1: memref<16x128xf32, #tpu.memory_space<vmem>>, %arg2: memref<16x128xf32, #tpu.memory_space<vmem>>, %arg3: memref<16x128xf32, #tpu.memory_space<vmem>>) attributes {dimension_semantics = [#tpu.dimension_semantics<parallel>], iteration_bounds = array<i64: 1>, scalar_prefetch = 0 : i64, scratch_operands = 0 : i64, tpu.core_type = #tpu.core_type<tc>, window_params = [{transform_indices = @transform_0, window_bounds = array<i64: 16, 128>}, {transform_indices = @transform_1, window_bounds = array<i64: 16, 128>}, {transform_indices = @transform_2, window_bounds = array<i64: 16, 128>}]} {
    %c0 = arith.constant 0 : index
    %c0_0 = arith.constant 0 : index
    %0 = vector.load %arg2[%c0, %c0_0] : memref<16x128xf32, #tpu.memory_space<vmem>>, vector<16x128xf32>
    %cst = arith.constant 0.000000e+00 : f32
    %1 = vector.broadcast %cst : f32 to vector<16x128xf32>
    %2 = arith.cmpf oge, %0, %1 : vector<16x128xf32>
    %c0_1 = arith.constant 0 : index
    %c0_2 = arith.constant 0 : index
    %3 = vector.load %arg1[%c0_1, %c0_2] : memref<16x128xf32, #tpu.memory_space<vmem>>, vector<16x128xf32>
    %4 = arith.select %2, %0, %3 : vector<16x128xi1>, vector<16x128xf32>
    %c0_3 = arith.constant 0 : index
    %c0_4 = arith.constant 0 : index
    %5 = vector.load %arg3[%c0_3, %c0_4] : memref<16x128xf32, #tpu.memory_space<vmem>>, vector<16x128xf32>
    tpu.vector_store %arg3[%c0_3, %c0_4], %4 {strides = array<i32>} : memref<16x128xf32, #tpu.memory_space<vmem>>, vector<16x128xf32>,
    return
  }
  func.func @transform_0(%arg0: i32) -> (i32, i32) {
    %c0_i32 = arith.constant 0 : i32
    %c0_i32_0 = arith.constant 0 : i32
    return %arg0, %c0_i32 : i32, i32
  }
  func.func @transform_1(%arg0: i32) -> (i32, i32) {
    %c0_i32 = arith.constant 0 : i32
    %c0_i32_0 = arith.constant 0 : i32
    return %arg0, %c0_i32 : i32, i32
  }
  func.func @transform_2(%arg0: i32) -> (i32, i32) {
    %c0_i32 = arith.constant 0 : i32
    %c0_i32_0 = arith.constant 0 : i32
    return %arg0, %c0_i32 : i32, i32
  }
}

</mosaic_0001>

<llo_original>
// kernel: tpu_custom_call.1
$region0: #{tpu_custom_call.1}
  #allocation0 [shape = 'u32[]', space=smem, size = 0x4, offset = 0x4, fixed_abs, tag = 'smem constant byte address 0x4 - core index']
  #allocation1 [shape = 'u32[144,128]{1,0:T(1,128)}', space=vmem, size = 0x12000, scoped, tag = 'internal scratch']
  %s0 = inlined_call_operand.hbm [shape: f32[16,128], index: 0, kind: input, shape index: {}, may-alias: {0,2}]
  %s1 = inlined_call_operand.vmem [shape: f32[16,128], index: 1, kind: input, shape index: {}]
  %s2 = inlined_call_operand.hbm [shape: f32[16,128], index: 2, kind: output, shape index: {}, may-alias: {0,2}]
  %s3 = sld [smem:[#allocation0]]
  $region22: #{tpu_custom_call.1} parent=0
    _
  %s5 = ssub.s32 1, %s3
  %s6 = scalar_select 0, %s5, %s3
  $region1: #{tpu_custom_call.1} parent=0
    #allocation2 [shape = 'u8[8192]{0}', space=vmem, size = 0x2000, scoped, tag = 'input window, operand 0, single buffered']
    #allocation3 [shape = 's32[1]{0}', space=sflag, size = 0x4, scoped, tag = 'scoped memory for tpu_custom_call.1']
    #allocation4 [shape = 's32[1]{0}', space=sflag, size = 0x4, scoped, tag = 'scoped memory for tpu_custom_call.1']
    #allocation5 [shape = 'u8[8192]{0}', space=vmem, size = 0x2000, scoped, tag = 'output window, operand 0, single buffered']
    %7 = vsyncpa [#allocation3], 0
    %8 = vsyncpa [#allocation4], 0
    // Predicated region
    $region2: #{tpu_custom_call.1} parent=1 // pred_check
      _
    $region3: #{tpu_custom_call.1} parent=1 // pred_check_branch
      %10 = sbr.rel (0) target = $region5
    $region4: #{tpu_custom_call.1} parent=1 // pred_region
      %s12 = ssub.s32 256, 256
      %13 = vsyncadd [#allocation3], %s12
      %s14 = sshll.u32 [#allocation2], 4
      %s15 = int_to_ptr.vmem [resolvable:$true] %s14
      %20 = dma.hbm_to_vmem [thread:$0]  %s0, 256, %s15, [#allocation3], 128, 128, 8
    $region5: #{tpu_custom_call.1} parent=1 // pred_fallthru
      _
    // Predicated region
    $region6: #{tpu_custom_call.1} parent=1 // pred_check
      _
    $region7: #{tpu_custom_call.1} parent=1 // pred_check_branch
      %22 = sbr.rel (0) target = $region9
    $region8: #{tpu_custom_call.1} parent=1 // pred_region
      _
    $region9: #{tpu_custom_call.1} parent=1 // pred_fallthru
      _
    // Predicated region
    $region10: #{tpu_custom_call.1} parent=1 // pred_check
      _
    $region11: #{tpu_custom_call.1} parent=1 // pred_check_branch
      %24 = sbr.rel (0) target = $region13
    $region12: #{tpu_custom_call.1} parent=1 // pred_region
      %25 = dma.done [#allocation3], 256
    $region13: #{tpu_custom_call.1} parent=1 // pred_fallthru
      _
    %v26 = vld [vmem:[%s1] sm:$0xff]
    %v27 = vld [vmem:[%s1 + $0x8] sm:$0xff]
    %vm28 = vcmp.ge.f32.partialorder %v26, 0.0
    %vm29 = vcmp.ge.f32.partialorder %v27, 0.0
    %v30 = vld [vmem:[#allocation2] sm:$0xff]
    %v31 = vld [vmem:[#allocation2 + $0x8] sm:$0xff]
    %v32 = vsel %vm28, %v26, %v30
    %v33 = vsel %vm29, %v27, %v31
    %34 = vst [vmem:[#allocation5] sm:$0xff] %v32
    %35 = vst [vmem:[#allocation5 + $0x8] sm:$0xff] %v33
    // Predicated region
    $region14: #{tpu_custom_call.1} parent=1 // pred_check
      _
    $region15: #{tpu_custom_call.1} parent=1 // pred_check_branch
      %37 = sbr.rel (0) target = $region17
    $region16: #{tpu_custom_call.1} parent=1 // pred_region
      %s39 = ssub.s32 256, 256
      %40 = vsyncadd [#allocation4], %s39
      %s41 = sshll.u32 [#allocation5], 4
      %s42 = int_to_ptr.vmem [resolvable:$true] %s41
      %47 = dma.vmem_to_hbm [thread:$0]  %s42, 256, %s2, [#allocation4], 128, 128, 8
    $region17: #{tpu_custom_call.1} parent=1 // pred_fallthru
      _
    // Predicated region
    $region18: #{tpu_custom_call.1} parent=1 // pred_check
      _
    $region19: #{tpu_custom_call.1} parent=1 // pred_check_branch
      %49 = sbr.rel (0) target = $region21
    $region20: #{tpu_custom_call.1} parent=1 // pred_region
      %50 = dma.done [#allocation4], 256
    $region21: #{tpu_custom_call.1} parent=1 // pred_fallthru
      _
    %51 = vsyncpa [#allocation3], 1
    %52 = vsyncpa [#allocation4], 1

</llo_original>
